<compile_context>
chip_gen: v7x
topology: tpu7x:2x2x1
jax: 0.10.0
libtpu: 0.0.40
codegen_flags: <defaults>
</compile_context>

<pallas_src>
import jax
import jax.numpy as jnp
from jax.experimental import pallas as pl
from jax.experimental.pallas import tpu as pltpu


def _droppath_kernel(x_ref, s_ref, o_ref):
    """x_ref: (BN, BF), s_ref: (BN, 1) per-sample scale, o_ref: (BN, BF)."""
    o_ref[...] = (x_ref[...] * s_ref[...]).astype(o_ref.dtype)


def drop_path(x, *, drop_prob=0.0, training=True, key=None):
    """DropPath forward. x is NCHW (any trailing shape works)."""
    if (not training) or drop_prob <= 0.0:
        return x  # identity path, same as the PyTorch module

    keep_prob = 1.0 - float(drop_prob)
    N = x.shape[0]
    F = 1
    for d in x.shape[1:]:
        F *= int(d)
    x2 = x.reshape(N, F)

    if key is None:
        key = jax.random.PRNGKey(0)

    # Per-sample Bernoulli(keep_prob) mask, computed once (not per grid step).
    mask = jax.random.bernoulli(key, p=keep_prob, shape=(N, 1))
    scale = jnp.where(mask, jnp.float32(1.0 / keep_prob), jnp.float32(0.0))
    scale = scale.astype(x.dtype)  # keep activation dtype (no f32 promotion)

    # --- Tile selection -----------------------------------------------------
    # Batch blocks: full extent for tiny N, else multiples of 8 (sublane rule).
    if N <= 8:
        BN = N
    else:
        BN = 8 * min(8, N // 8)  # up to 64 samples per block

    # Feature blocks: lane-dense (multiple of 128) whenever possible.
    MAX_BF = 4096
    if F % 128 == 0:
        BF = min(F, MAX_BF)
    elif F <= MAX_BF:
        BF = F  # full-extent last dim is legal even if not a multiple of 128
    else:
        BF = MAX_BF  # divisible by 128; Pallas masks the ragged tail

    grid = (pl.cdiv(N, BN), pl.cdiv(F, BF))

    grid_spec = pltpu.PrefetchScalarGridSpec(
        num_scalar_prefetch=0,
        grid=grid,
        in_specs=[
            pl.BlockSpec((BN, BF), lambda i, j: (i, j)),   # x tile
            pl.BlockSpec((BN, 1), lambda i, j: (i, 0)),    # per-sample scale
        ],
        out_specs=pl.BlockSpec((BN, BF), lambda i, j: (i, j)),
    )

    out2 = pl.pallas_call(
        _droppath_kernel,
        out_shape=jax.ShapeDtypeStruct((N, F), x.dtype),
        grid_spec=grid_spec,
        compiler_params=pltpu.CompilerParams(
            dimension_semantics=("parallel", "parallel"),
        ),
    )(x2, scale)

    return out2.reshape(x.shape)


if __name__ == "__main__":
    key = jax.random.PRNGKey(0)
    k_data, k_drop = jax.random.split(key)
    x = jax.random.normal(k_data, (2, 4, 16, 16), dtype=jnp.float32)

    drop_prob = 0.1
    keep_prob = 1.0 - drop_prob

    # Training path with drop_prob > 0 — the actual Pallas kernel.
    out_train = drop_path(x, drop_prob=drop_prob, training=True, key=k_drop)
    out_train = jax.block_until_ready(out_train)

    # Sanity: each sample is either all-zero or x / keep_prob for that sample.
    for b in range(x.shape[0]):
        ob = out_train[b]
        if bool(jnp.all(ob == 0.0)):
            pass  # dropped sample
        else:
            assert jnp.allclose(ob, x[b] / keep_prob, rtol=1e-6, atol=1e-6)

    # Eval / drop_prob == 0 path — identity.
    out_eval = drop_path(x, drop_prob=drop_prob, training=False)
    out_eval = jax.block_until_ready(out_eval)
    assert jnp.array_equal(out_eval, x)

    print("KERNEL_OK")
</pallas_src>

<mosaic_0001>
module attributes {stable_mosaic.version = 11 : i64} {
  func.func @_droppath_kernel(%arg0: i32, %arg1: i32, %arg2: memref<2x1024xf32, #tpu.memory_space<vmem>>, %arg3: memref<2x1xf32, #tpu.memory_space<vmem>>, %arg4: memref<2x1024xf32, #tpu.memory_space<vmem>>) attributes {dimension_semantics = [#tpu.dimension_semantics<parallel>, #tpu.dimension_semantics<parallel>], iteration_bounds = array<i64: 1, 1>, scalar_prefetch = 0 : i64, scratch_operands = 0 : i64, tpu.core_type = #tpu.core_type<tc>, window_params = [{transform_indices = @transform_0, window_bounds = array<i64: 2, 1024>}, {transform_indices = @transform_1, window_bounds = array<i64: 2, 1>}, {transform_indices = @transform_2, window_bounds = array<i64: 2, 1024>}]} {
    %c0 = arith.constant 0 : index
    %c0_0 = arith.constant 0 : index
    %0 = vector.load %arg2[%c0, %c0_0] : memref<2x1024xf32, #tpu.memory_space<vmem>>, vector<2x1024xf32>
    %c0_1 = arith.constant 0 : index
    %c0_2 = arith.constant 0 : index
    %1 = vector.load %arg3[%c0_1, %c0_2] : memref<2x1xf32, #tpu.memory_space<vmem>>, vector<2x1xf32>
    %2 = vector.broadcast %1 : vector<2x1xf32> to vector<2x1024xf32>
    %3 = arith.mulf %0, %2 : vector<2x1024xf32>
    %c0_3 = arith.constant 0 : index
    %c0_4 = arith.constant 0 : index
    %4 = vector.load %arg4[%c0_3, %c0_4] : memref<2x1024xf32, #tpu.memory_space<vmem>>, vector<2x1024xf32>
    tpu.vector_store %arg4[%c0_3, %c0_4], %3 {strides = array<i32>} : memref<2x1024xf32, #tpu.memory_space<vmem>>, vector<2x1024xf32>,
    return
  }
  func.func @transform_0(%arg0: i32, %arg1: i32) -> (i32, i32) {
    %c0_i32 = arith.constant 0 : i32
    return %arg0, %arg1 : i32, i32
  }
  func.func @transform_1(%arg0: i32, %arg1: i32) -> (i32, i32) {
    %c0_i32 = arith.constant 0 : i32
    %c0_i32_0 = arith.constant 0 : i32
    return %arg0, %c0_i32 : i32, i32
  }
  func.func @transform_2(%arg0: i32, %arg1: i32) -> (i32, i32) {
    %c0_i32 = arith.constant 0 : i32
    return %arg0, %arg1 : i32, i32
  }
}

</mosaic_0001>

<llo_original>
// kernel: tpu_custom_call.1
$region0: #{tpu_custom_call.1}
  #allocation0 [shape = 'u32[]', space=smem, size = 0x4, offset = 0x4, fixed_abs, tag = 'smem constant byte address 0x4 - core index']
  #allocation1 [shape = 'u32[144,128]{1,0:T(1,128)}', space=vmem, size = 0x12000, scoped, tag = 'internal scratch']
  %s0 = inlined_call_operand.hbm [shape: f32[2,1024], index: 0, kind: input, shape index: {}]
  %s1 = inlined_call_operand.vmem [shape: f32[2,1], index: 1, kind: input, shape index: {}]
  %s2 = inlined_call_operand.hbm [shape: f32[2,1024], index: 2, kind: output, shape index: {}]
  %s3 = sld [smem:[#allocation0]]
  $region22: #{tpu_custom_call.1} parent=0
    _
  %s5 = ssub.s32 1, %s3
  %s6 = scalar_select 0, %s5, %s3
  $region1: #{tpu_custom_call.1} parent=0
    #allocation2 [shape = 'u8[8192]{0}', space=vmem, size = 0x2000, scoped, tag = 'input window, operand 0, single buffered']
    #allocation3 [shape = 's32[1]{0}', space=sflag, size = 0x4, scoped, tag = 'scoped memory for tpu_custom_call.1']
    #allocation4 [shape = 's32[1]{0}', space=sflag, size = 0x4, scoped, tag = 'scoped memory for tpu_custom_call.1']
    #allocation5 [shape = 'u8[8192]{0}', space=vmem, size = 0x2000, scoped, tag = 'output window, operand 0, single buffered']
    %7 = vsyncpa [#allocation3], 0
    %8 = vsyncpa [#allocation4], 0
    // Predicated region
    $region2: #{tpu_custom_call.1} parent=1 // pred_check
      _
    $region3: #{tpu_custom_call.1} parent=1 // pred_check_branch
      %10 = sbr.rel (0) target = $region5
    $region4: #{tpu_custom_call.1} parent=1 // pred_region
      %s12 = ssub.s32 256, 256
      %13 = vsyncadd [#allocation3], %s12
      %s15 = sshll.u32 [#allocation2], 4
      %s16 = int_to_ptr.vmem [resolvable:$true] %s15
      %18 = dma.hbm_to_vmem [thread:$0]  %s0, 256, %s16, [#allocation3]
    $region5: #{tpu_custom_call.1} parent=1 // pred_fallthru
      _
    // Predicated region
    $region6: #{tpu_custom_call.1} parent=1 // pred_check
      _
    $region7: #{tpu_custom_call.1} parent=1 // pred_check_branch
      %20 = sbr.rel (0) target = $region9
    $region8: #{tpu_custom_call.1} parent=1 // pred_region
      _
    $region9: #{tpu_custom_call.1} parent=1 // pred_fallthru
      _
    // Predicated region
    $region10: #{tpu_custom_call.1} parent=1 // pred_check
      _
    $region11: #{tpu_custom_call.1} parent=1 // pred_check_branch
      %22 = sbr.rel (0) target = $region13
    $region12: #{tpu_custom_call.1} parent=1 // pred_region
      %23 = dma.done [#allocation3], 256
    $region13: #{tpu_custom_call.1} parent=1 // pred_fallthru
      _
    %v24 = vld [vmem:[#allocation2] sm:$0xff]
    %v25 = vld [vmem:[#allocation2 + $0x8] sm:$0xff]
    %v26 = vld [vmem:[%s1] sm:$0x3]
    %28 = vset.pattern.permute.xlu0 0
    %29 = vperm.xlu0 %28, %v26
    %v30 = vpop.permute.xlu0 %29
    %v32 = vunpack.c.l.s4 269488144
    %v33 = vunpack.c.0.s8 %v32
    %v34 = vlaneseq
    %v35 = vshrl.u32 %v34, 7
    %v36 = vsub.s32 %v33, %v35
    %v37 = vrot.slane %v30, %v36
    %v39 = vmul.f32 %v24, %v37
    %v40 = vmul.f32 %v25, %v37
    %41 = vst [vmem:[#allocation5] sm:$0xff] %v39
    %42 = vst [vmem:[#allocation5 + $0x8] sm:$0xff] %v40
    // Predicated region
    $region14: #{tpu_custom_call.1} parent=1 // pred_check
      _
    $region15: #{tpu_custom_call.1} parent=1 // pred_check_branch
      %44 = sbr.rel (0) target = $region17
    $region16: #{tpu_custom_call.1} parent=1 // pred_region
      %s46 = ssub.s32 256, 256
      %47 = vsyncadd [#allocation4], %s46
      %s49 = sshll.u32 [#allocation5], 4
      %s50 = int_to_ptr.vmem [resolvable:$true] %s49
      %52 = dma.vmem_to_hbm [thread:$0]  %s50, 256, %s2, [#allocation4]
    $region17: #{tpu_custom_call.1} parent=1 // pred_fallthru
      _
    // Predicated region
    $region18: #{tpu_custom_call.1} parent=1 // pred_check
      _
    $region19: #{tpu_custom_call.1} parent=1 // pred_check_branch
      %54 = sbr.rel (0) target = $region21
    $region20: #{tpu_custom_call.1} parent=1 // pred_region
      %55 = dma.done [#allocation4], 256
    $region21: #{tpu_custom_call.1} parent=1 // pred_fallthru
      _
    %56 = vsyncpa [#allocation3], 1
    %57 = vsyncpa [#allocation4], 1

</llo_original>
